<compile_context>
chip_gen: v7x
topology: tpu7x:2x2x1
jax: 0.10.0
libtpu: 0.0.40
codegen_flags: <defaults>
</compile_context>

<pallas_src>
import jax
import jax.numpy as jnp
from jax import lax
from jax.experimental import pallas as pl
from jax.experimental.pallas import tpu as pltpu


def _round_up(x, m):
    return (x + m - 1) // m * m


def _im2col(x, Hz, Wz):
    """(N, C, Hx, Wx) -> (N, C*Hz*Wz, Ho*Wo); K ordered as (c, dh, dw)."""
    N, C, Hx, Wx = x.shape
    Ho, Wo = Hx - Hz + 1, Wx - Wz + 1
    cols = []
    for dh in range(Hz):
        for dw in range(Wz):
            cols.append(x[:, :, dh:dh + Ho, dw:dw + Wo].reshape(N, C, Ho * Wo))
    patches = jnp.stack(cols, axis=2)                  # (N, C, Hz*Wz, P)
    return patches.reshape(N, C * Hz * Wz, Ho * Wo)    # (N, K, P)


def _corr_up_kernel(z_ref, x_ref, w_ref, b_ref, o_ref):
    # z_ref: (1, 1, K) VMEM     x_ref: (1, K, TP) VMEM
    # w_ref, b_ref: (1,) SMEM scalars of the fused loc_adjust Conv2d(1,1,1)
    # o_ref: (1, 1, TP) VMEM (f32, lane-dense)
    acc = jnp.dot(z_ref[0], x_ref[0],
                  preferred_element_type=jnp.float32)   # (1, TP) on the MXU
    o_ref[0] = (acc * w_ref[0] + b_ref[0]).astype(o_ref.dtype)


def corr_up(z_f, x_f, loc_w, loc_b, tracking=True):
    """Pallas implementation of Corr_Up.forward(z_f, x_f)."""
    N, C, Hx, Wx = x_f.shape
    O, Cz, Hz, Wz = z_f.shape
    assert Cz == C
    if tracking:
        # pred_loc = loc_adjust(F.conv2d(x_f, z_f)); single shared template
        assert O == 1
        z_idx = lambda n, p: (0, 0, 0)
    else:
        # grouped conv (groups=N) + transpose(0,1): template n for batch n
        assert O == N
        z_idx = lambda n, p: (n, 0, 0)

    Ho, Wo = Hx - Hz + 1, Wx - Wz + 1
    P = Ho * Wo
    K = C * Hz * Wz

    # Lane tile for the flattened spatial output (multiple of 128; >=256 fills
    # the 2x256 MXU on v6e/v7x). Pad the reduction axis K to a sublane multiple.
    TP = min(_round_up(P, 128), 512)
    P_pad = _round_up(P, TP)
    K_pad = _round_up(K, 8)

    # im2col + padding in XLA (layout plumbing): K on sublanes, spatial on lanes.
    x_cols = _im2col(x_f, Hz, Wz)                                   # (N, K, P)
    x_cols = jnp.pad(x_cols, ((0, 0), (0, K_pad - K), (0, P_pad - P)))
    z_flat = jnp.pad(z_f.reshape(O, 1, K), ((0, 0), (0, 0), (0, K_pad - K)))

    w = loc_w.reshape((1,)).astype(jnp.float32)
    b = loc_b.reshape((1,)).astype(jnp.float32)

    grid = (N, P_pad // TP)
    out_flat = pl.pallas_call(
        _corr_up_kernel,
        out_shape=jax.ShapeDtypeStruct((N, 1, P_pad), jnp.float32),
        grid=grid,
        in_specs=[
            pl.BlockSpec((1, 1, K_pad), z_idx),
            pl.BlockSpec((1, K_pad, TP), lambda n, p: (n, 0, p)),
            pl.BlockSpec(memory_space=pltpu.MemorySpace.SMEM),
            pl.BlockSpec(memory_space=pltpu.MemorySpace.SMEM),
        ],
        out_specs=pl.BlockSpec((1, 1, TP), lambda n, p: (n, 0, p)),
        compiler_params=pltpu.CompilerParams(
            dimension_semantics=("parallel", "parallel")),
    )(z_flat, x_cols, w, b)

    return out_flat[:, :, :P].reshape(N, 1, Ho, Wo)


if __name__ == "__main__":
    key = jax.random.PRNGKey(0)
    kx, kz, kz2 = jax.random.split(key, 3)

    N, C, Hx, Wx = 2, 4, 16, 16
    Hz, Wz = 4, 4
    Ho, Wo = Hx - Hz + 1, Wx - Wz + 1

    # bf16 inputs end-to-end, f32 accumulation inside the kernel.
    x_f = jax.random.normal(kx, (N, C, Hx, Wx), dtype=jnp.float32).astype(jnp.bfloat16)
    z_f = jax.random.normal(kz, (1, C, Hz, Wz), dtype=jnp.float32).astype(jnp.bfloat16)

    # deterministic loc_adjust (nn.Conv2d(1, 1, kernel_size=1)) parameters
    loc_w = jnp.array([[[[0.75]]]], dtype=jnp.float32)   # weight (1,1,1,1)
    loc_b = jnp.array([0.1], dtype=jnp.float32)          # bias   (1,)
    wv = loc_w[0, 0, 0, 0]
    bv = loc_b[0]

    # ---- tracking=True path -------------------------------------------------
    out = corr_up(z_f, x_f, loc_w, loc_b, tracking=True)
    out = jax.block_until_ready(out)

    ref = lax.conv_general_dilated(
        x_f.astype(jnp.float32), z_f.astype(jnp.float32),
        window_strides=(1, 1), padding="VALID",
        dimension_numbers=("NCHW", "OIHW", "NCHW"),
    ) * wv + bv

    assert out.shape == (N, 1, Ho, Wo)
    assert jnp.allclose(out, ref, atol=1e-2, rtol=1e-2)

    # ---- tracking=False path (per-batch template) ---------------------------
    z_nt = jax.random.normal(kz2, (N, C, Hz, Wz), dtype=jnp.float32).astype(jnp.bfloat16)
    out_nt = corr_up(z_nt, x_f, loc_w, loc_b, tracking=False)
    out_nt = jax.block_until_ready(out_nt)

    ref_nt = lax.conv_general_dilated(
        x_f.astype(jnp.float32).reshape(1, N * C, Hx, Wx),
        z_nt.astype(jnp.float32),
        window_strides=(1, 1), padding="VALID",
        dimension_numbers=("NCHW", "OIHW", "NCHW"),
        feature_group_count=N,
    )                                            # (1, N, Ho, Wo)
    ref_nt = jnp.swapaxes(ref_nt, 0, 1) * wv + bv  # (N, 1, Ho, Wo)

    assert out_nt.shape == (N, 1, Ho, Wo)
    assert jnp.allclose(out_nt, ref_nt, atol=1e-2, rtol=1e-2)

    print("KERNEL_OK")
</pallas_src>

<mosaic_0001>
module attributes {stable_mosaic.version = 11 : i64} {
  func.func @_corr_up_kernel(%arg0: i32, %arg1: i32, %arg2: memref<1x1x64xbf16, #tpu.memory_space<vmem>>, %arg3: memref<1x64x256xbf16, #tpu.memory_space<vmem>>, %arg4: memref<1xf32, #tpu.memory_space<smem>>, %arg5: memref<1xf32, #tpu.memory_space<smem>>, %arg6: memref<1x1x256xf32, #tpu.memory_space<vmem>>) attributes {dimension_semantics = [#tpu.dimension_semantics<parallel>, #tpu.dimension_semantics<parallel>], iteration_bounds = array<i64: 2, 1>, scalar_prefetch = 0 : i64, scratch_operands = 0 : i64, tpu.core_type = #tpu.core_type<tc>, window_params = [{pipeline_mode = #tpu.pipeline_mode<synchronous>, transform_indices = @transform_0, window_bounds = array<i64: 1, 1, 64>}, {transform_indices = @transform_1, window_bounds = array<i64: 1, 64, 256>}, {transform_indices = @transform_2, window_bounds = array<i64: 1>}, {transform_indices = @transform_3, window_bounds = array<i64: 1>}, {transform_indices = @transform_4, window_bounds = array<i64: 1, 1, 256>}]} {
    %c0 = arith.constant 0 : index
    %c0_0 = arith.constant 0 : index
    %c0_1 = arith.constant 0 : index
    %0 = vector.load %arg2[%c0, %c0_0, %c0_1] : memref<1x1x64xbf16, #tpu.memory_space<vmem>>, vector<1x1x64xbf16>
    %1 = vector.shape_cast %0 : vector<1x1x64xbf16> to vector<1x64xbf16>
    %c0_2 = arith.constant 0 : index
    %c0_3 = arith.constant 0 : index
    %c0_4 = arith.constant 0 : index
    %2 = vector.load %arg3[%c0_2, %c0_3, %c0_4] : memref<1x64x256xbf16, #tpu.memory_space<vmem>>, vector<1x64x256xbf16>
    %3 = vector.shape_cast %2 : vector<1x64x256xbf16> to vector<64x256xbf16>
    %cst = arith.constant dense<0.000000e+00> : vector<1x256xf32>
    %4 = tpu.matmul %1, %3, %cst {dimension_numbers = #tpu.dot_dimension_numbers<[1], [0], [0], [1], [0, 0, 1, 1], [], []>} : vector<1x64xbf16>, vector<64x256xbf16>, vector<1x256xf32> -> vector<1x256xf32>
    %c0_5 = arith.constant 0 : index
    %5 = memref.load %arg4[%c0_5] : memref<1xf32, #tpu.memory_space<smem>>
    %6 = vector.broadcast %5 : f32 to vector<1x256xf32>
    %7 = arith.mulf %4, %6 : vector<1x256xf32>
    %c0_6 = arith.constant 0 : index
    %8 = memref.load %arg5[%c0_6] : memref<1xf32, #tpu.memory_space<smem>>
    %9 = vector.broadcast %8 : f32 to vector<1x256xf32>
    %10 = arith.addf %7, %9 : vector<1x256xf32>
    %c0_7 = arith.constant 0 : index
    %c0_8 = arith.constant 0 : index
    %c0_9 = arith.constant 0 : index
    %11 = vector.load %arg6[%c0_7, %c0_8, %c0_9] : memref<1x1x256xf32, #tpu.memory_space<vmem>>, vector<1x1x256xf32>
    %12 = vector.shape_cast %11 : vector<1x1x256xf32> to vector<1x256xf32>
    %13 = vector.shape_cast %10 : vector<1x256xf32> to vector<1x1x256xf32>
    tpu.vector_store %arg6[%c0_7, %c0_8, %c0_9], %13 {strides = array<i32>} : memref<1x1x256xf32, #tpu.memory_space<vmem>>, vector<1x1x256xf32>,
    return
  }
  func.func @transform_0(%arg0: i32, %arg1: i32) -> (i32, i32, i32) {
    %c0_i32 = arith.constant 0 : i32
    %c0_i32_0 = arith.constant 0 : i32
    %c0_i32_1 = arith.constant 0 : i32
    %c0_i32_2 = arith.constant 0 : i32
    return %c0_i32, %c0_i32_0, %c0_i32_1 : i32, i32, i32
  }
  func.func @transform_1(%arg0: i32, %arg1: i32) -> (i32, i32, i32) {
    %c0_i32 = arith.constant 0 : i32
    %c0_i32_0 = arith.constant 0 : i32
    return %arg0, %c0_i32, %arg1 : i32, i32, i32
  }
  func.func @transform_2(%arg0: i32, %arg1: i32) -> i32 {
    %c0_i32 = arith.constant 0 : i32
    %c0_i32_0 = arith.constant 0 : i32
    return %c0_i32 : i32
  }
  func.func @transform_3(%arg0: i32, %arg1: i32) -> i32 {
    %c0_i32 = arith.constant 0 : i32
    %c0_i32_0 = arith.constant 0 : i32
    return %c0_i32 : i32
  }
  func.func @transform_4(%arg0: i32, %arg1: i32) -> (i32, i32, i32) {
    %c0_i32 = arith.constant 0 : i32
    %c0_i32_0 = arith.constant 0 : i32
    return %arg0, %c0_i32, %arg1 : i32, i32, i32
  }
}

</mosaic_0001>

<llo_original>
// kernel: tpu_custom_call.1
$region0: #{tpu_custom_call.1}
  #allocation0 [shape = 'u32[]', space=smem, size = 0x4, offset = 0x4, fixed_abs, tag = 'smem constant byte address 0x4 - core index']
  #allocation1 [shape = 'u32[144,128]{1,0:T(1,128)}', space=vmem, size = 0x12000, scoped, tag = 'internal scratch']
  #allocation2 [shape = 'f32[1]{0:T(128)S(6)}', space=smem, size = 0x200, scoped, tag = 'scoped memory for tpu_custom_call.1']
  #allocation3 [shape = 'f32[1]{0:T(128)S(6)}', space=smem, size = 0x200, scoped, tag = 'scoped memory for tpu_custom_call.1']
  %s0 = inlined_call_operand.vmem [shape: bf16[1,1,64], index: 0, kind: input, shape index: {}]
  %s1 = inlined_call_operand.hbm [shape: bf16[2,64,256], index: 1, kind: input, shape index: {}]
  %s2 = inlined_call_operand.<no memory space> [shape: f32[1], index: 2, kind: input, shape index: {}]
  %s3 = inlined_call_operand.<no memory space> [shape: f32[1], index: 3, kind: input, shape index: {}]
  %s4 = inlined_call_operand.hbm [shape: f32[2,1,256], index: 4, kind: output, shape index: {}]
  %s5 = sld [smem:[#allocation0]]
  $region53: #{tpu_custom_call.1} parent=0
    _
  %s7 = ssub.s32 1, %s5
  %s8 = scalar_select 0, %s7, %s5
  %9 = sst [smem:[#allocation2]] %s2
  %10 = sst [smem:[#allocation3]] %s3
  $region1: #{tpu_custom_call.1} parent=0
    #allocation4 [shape = 'u8[65536]{0}', space=vmem, size = 0x10000, scoped, tag = 'input window, operand 1']
    #allocation5 [shape = 's32[2]{0}', space=sflag, size = 0x8, scoped, tag = 'scoped memory for tpu_custom_call.1']
    #allocation6 [shape = 's32[2]{0}', space=sflag, size = 0x8, scoped, tag = 'scoped memory for tpu_custom_call.1']
    #allocation7 [shape = 'u8[2048]{0}', space=vmem, size = 0x800, scoped, tag = 'output window, operand 0']
    %11 = vsyncpa [#allocation5], 0
    %s12 = scalar_lea.sflag [#allocation5], 1
    %13 = vsyncpa %s12, 0
    %14 = vsyncpa [#allocation6], 0
    %s15 = scalar_lea.sflag [#allocation6], 1
    %16 = vsyncpa %s15, 0
    loop: start=0, step=1, limit=4
    $region2: #{tpu_custom_call.1} parent=1 // loop_pre_header
      _
    $region3: #{tpu_custom_call.1} parent=1 // loop_header
      %s18 = sphi 0, %s22
      %p19 = scmp.ge.s32.totalorder %s18, 4
      %s25 = sphi 0, %s37
      %s26 = sphi 0, %s33
      %s27 = sphi 0, %s25
      %s28 = sphi 0, %s26
      %s29 = sphi 0, %s27
      %s30 = sphi 0, %s28
      %s38 = sphi 0, %s38
      %s40 = sphi 0, %s38
      %s41 = sphi 0, %s40
      %s55 = sphi 0, %s41
      %s63 = sphi 0, %s65
      %s66 = sphi 0, %s63
      %s67 = sphi 0, %s66
      %s83 = sphi 0, %s67
      %s87 = sphi 0, %s87
      %s89 = sphi 0, %s87
      %s90 = sphi 0, %s89
      %s104 = sphi 0, %s90
      %s108 = sphi 0, %s108
      %s110 = sphi 0, %s108
      %s111 = sphi 0, %s110
      %s125 = sphi 0, %s111
      %s133 = sphi 0, %s135
      %s136 = sphi 0, %s133
      %s137 = sphi 0, %s136
      %s153 = sphi 0, %s137
    $region4: #{tpu_custom_call.1} parent=1 // loop_header_branch
      %21 = sbr.rel (%p19) target = $region8
    $region5: #{tpu_custom_call.1} parent=1 // loop_body
      %s23 = ssub.s32 %s18, 1
      %s24 = ssub.s32 %s18, 2
      %s31 = sadd.s32 1, %s26
      %p32 = scmp.ge.s32.totalorder %s31, 1
      %s33 = scalar_select %p32, 0, %s31
      %s34 = sadd.s32 1, %s25
      %s35 = scalar_select %p32, %s34, %s25
      %p36 = scmp.ge.s32.totalorder %s35, 2
      %s37 = scalar_select %p36, 0, %s35
      %s39 = sadd.s32 %s38, 1
      %p42 = scmp.eq.s32.totalorder %s18, 1
      %p43 = scmp.ne.s32.totalorder %s38, %s40
      %p44 = scmp.eq.s32.totalorder %s18, 0
      %p45 = por %p43, %p44
      %p46 = scmp.ne.s32.totalorder %s38, %s40
      %p47 = scmp.eq.s32.totalorder %s23, 1
      %p48 = por %p46, %p47
      %p49 = scmp.ne.s32.totalorder %s40, %s41
      %p50 = scmp.eq.s32.totalorder %s23, 0
      %p51 = por %p49, %p50
      %p52 = scmp.ne.s32.totalorder %s40, %s41
      %p53 = scmp.eq.s32.totalorder %s24, 1
      %p54 = por %p52, %p53
      %p56 = scmp.ne.s32.totalorder %s41, %s55
      %p57 = scmp.eq.s32.totalorder %s24, 0
      %p58 = por %p56, %p57
      %s59 = ssub.s32 %s25, %s37
      %s60 = ssub.s32 %s26, %s33
      %s61 = sor.u32 %s59, %s60
      %p62 = scmp.eq.s32.totalorder %s61, 0
      %s64 = sadd.s32 %s63, 1
      %s65 = scalar_select %p62, %s63, %s64
      %p68 = pneg %p62
      %p69 = scmp.eq.s32.totalorder %s18, 1
      %p70 = por %p68, %p69
      %p71 = scmp.ne.s32.totalorder %s63, %s66
      %p72 = scmp.eq.s32.totalorder %s18, 0
      %p73 = por %p71, %p72
      %p74 = scmp.ne.s32.totalorder %s63, %s66
      %p75 = scmp.eq.s32.totalorder %s23, 1
      %p76 = por %p74, %p75
      %p77 = scmp.ne.s32.totalorder %s66, %s67
      %p78 = scmp.eq.s32.totalorder %s23, 0
      %p79 = por %p77, %p78
      %p80 = scmp.ne.s32.totalorder %s66, %s67
      %p81 = scmp.eq.s32.totalorder %s24, 1
      %p82 = por %p80, %p81
      %p84 = scmp.ne.s32.totalorder %s67, %s83
      %p85 = scmp.eq.s32.totalorder %s24, 0
      %p86 = por %p84, %p85
      %s88 = sadd.s32 %s87, 1
      %p91 = scmp.eq.s32.totalorder %s18, 1
      %p92 = scmp.ne.s32.totalorder %s87, %s89
      %p93 = scmp.eq.s32.totalorder %s18, 0
      %p94 = por %p92, %p93
      %p95 = scmp.ne.s32.totalorder %s87, %s89
      %p96 = scmp.eq.s32.totalorder %s23, 1
      %p97 = por %p95, %p96
      %p98 = scmp.ne.s32.totalorder %s89, %s90
      %p99 = scmp.eq.s32.totalorder %s23, 0
      %p100 = por %p98, %p99
      %p101 = scmp.ne.s32.totalorder %s89, %s90
      %p102 = scmp.eq.s32.totalorder %s24, 1
      %p103 = por %p101, %p102
      %p105 = scmp.ne.s32.totalorder %s90, %s104
      %p106 = scmp.eq.s32.totalorder %s24, 0
      %p107 = por %p105, %p106
      %s109 = sadd.s32 %s108, 1
      %p112 = scmp.eq.s32.totalorder %s18, 1
      %p113 = scmp.ne.s32.totalorder %s108, %s110
      %p114 = scmp.eq.s32.totalorder %s18, 0
      %p115 = por %p113, %p114
      %p116 = scmp.ne.s32.totalorder %s108, %s110
      %p117 = scmp.eq.s32.totalorder %s23, 1
      %p118 = por %p116, %p117
      %p119 = scmp.ne.s32.totalorder %s110, %s111
      %p120 = scmp.eq.s32.totalorder %s23, 0
      %p121 = por %p119, %p120
      %p122 = scmp.ne.s32.totalorder %s110, %s111
      %p123 = scmp.eq.s32.totalorder %s24, 1
      %p124 = por %p122, %p123
      %p126 = scmp.ne.s32.totalorder %s111, %s125
      %p127 = scmp.eq.s32.totalorder %s24, 0
      %p128 = por %p126, %p127
      %s129 = ssub.s32 %s25, %s37
      %s130 = ssub.s32 %s26, %s33
      %s131 = sor.u32 %s129, %s130
      %p132 = scmp.eq.s32.totalorder %s131, 0
      %s134 = sadd.s32 %s133, 1
      %s135 = scalar_select %p132, %s133, %s134
      %p138 = pneg %p132
      %p139 = scmp.eq.s32.totalorder %s18, 1
      %p140 = por %p138, %p139
      %p141 = scmp.ne.s32.totalorder %s133, %s136
      %p142 = scmp.eq.s32.totalorder %s18, 0
      %p143 = por %p141, %p142
      %p144 = scmp.ne.s32.totalorder %s133, %s136
      %p145 = scmp.eq.s32.totalorder %s23, 1
      %p146 = por %p144, %p145
      %p147 = scmp.ne.s32.totalorder %s136, %s137
      %p148 = scmp.eq.s32.totalorder %s23, 0
      %p149 = por %p147, %p148
      %p150 = scmp.ne.s32.totalorder %s136, %s137
      %p151 = scmp.eq.s32.totalorder %s24, 1
      %p152 = por %p150, %p151
      %p154 = scmp.ne.s32.totalorder %s137, %s153
      %p155 = scmp.eq.s32.totalorder %s24, 0
      %p156 = por %p154, %p155
      %p157 = scmp.le.s32.totalorder 1, %s18
      %p158 = scmp.lt.s32.totalorder %s18, 3
      %p159 = pnand %p157, %p158
      %p160 = pneg %p159
      // Predicated region
      $region9: #{tpu_custom_call.1} parent=5 // pred_check
        _
      $region10: #{tpu_custom_call.1} parent=5 // pred_check_branch
        %162 = sbr.rel (%p159) target = $region12
      $region11: #{tpu_custom_call.1} parent=5 // pred_region
        %s163 = ssub.s32 %s18, 1
        // Predicated region
        $region13: #{tpu_custom_call.1} parent=11 // pred_check
          %p164 = pneg %p51
        $region14: #{tpu_custom_call.1} parent=11 // pred_check_branch
          %166 = sbr.rel (%p164) target = $region16
        $region15: #{tpu_custom_call.1} parent=11 // pred_region
          _
        $region16: #{tpu_custom_call.1} parent=11 // pred_fallthru
          _
        // Predicated region
        $region17: #{tpu_custom_call.1} parent=11 // pred_check
          %p167 = pneg %p100
        $region18: #{tpu_custom_call.1} parent=11 // pred_check_branch
          %169 = sbr.rel (%p167) target = $region20
        $region19: #{tpu_custom_call.1} parent=11 // pred_region
          _
        $region20: #{tpu_custom_call.1} parent=11 // pred_fallthru
          _
        // Predicated region
        $region21: #{tpu_custom_call.1} parent=11 // pred_check
          %p170 = pneg %p121
        $region22: #{tpu_custom_call.1} parent=11 // pred_check_branch
          %172 = sbr.rel (%p170) target = $region24
        $region23: #{tpu_custom_call.1} parent=11 // pred_region
          _
        $region24: #{tpu_custom_call.1} parent=11 // pred_fallthru
          _
      $region12: #{tpu_custom_call.1} parent=5 // pred_fallthru
        _
      %p173 = scmp.lt.s32.totalorder %s18, 2
      // Predicated region
      $region25: #{tpu_custom_call.1} parent=5 // pred_check
        %p174 = pneg %p173
      $region26: #{tpu_custom_call.1} parent=5 // pred_check_branch
        %176 = sbr.rel (%p174) target = $region28
      $region27: #{tpu_custom_call.1} parent=5 // pred_region
        // Predicated region
        $region29: #{tpu_custom_call.1} parent=27 // pred_check
          %p177 = pneg %p73
        $region30: #{tpu_custom_call.1} parent=27 // pred_check_branch
          %179 = sbr.rel (%p177) target = $region32
        $region31: #{tpu_custom_call.1} parent=27 // pred_region
          %s180 = sand.u32 %s63, 1
          %s181 = scalar_lea.sflag [#allocation5], %s180
          %s182 = sand.u32 %s63, 1
          %s183 = smul.addr %s182, 64
          %s184 = scalar_lea.vmem [#allocation4], %s183
          %s185 = smul.u32 2, %s26
          %s187 = ssub.s32 1024, 1024
          %188 = vsyncadd %s181, %s187
          %s189 = smul.addr %s25, 16
          %s190 = sadd.s32 %s185, %s189
          %s191 = smul.addr %s190, 64
          %s192 = scalar_lea.hbm %s1, %s191
          %s193 = sshll.u32 %s184, 4
          %s194 = int_to_ptr.vmem [resolvable:$true] %s193
          %199 = dma.hbm_to_vmem [thread:$0]  %s192, 1024, %s194, %s181, 128, 128, 8
        $region32: #{tpu_custom_call.1} parent=27 // pred_fallthru
          _
      $region28: #{tpu_custom_call.1} parent=5 // pred_fallthru
        _
      %p200 = scmp.le.s32.totalorder 1, %s18
      %p201 = scmp.lt.s32.totalorder %s18, 3
      %p202 = pnand %p200, %p201
      %p203 = pneg %p202
      // Predicated region
      $region33: #{tpu_custom_call.1} parent=5 // pred_check
        _
      $region34: #{tpu_custom_call.1} parent=5 // pred_check_branch
        %205 = sbr.rel (%p202) target = $region36
      $region35: #{tpu_custom_call.1} parent=5 // pred_region
        %s206 = ssub.s32 %s18, 1
        %s207 = sand.u32 %s66, 1
        %s208 = scalar_lea.sflag [#allocation5], %s207
        %s209 = sand.u32 %s66, 1
        %s210 = smul.addr %s209, 64
        %s211 = scalar_lea.vmem [#allocation4], %s210
        // Predicated region
        $region37: #{tpu_custom_call.1} parent=35 // pred_check
          %p212 = pneg %p79
        $region38: #{tpu_custom_call.1} parent=35 // pred_check_branch
          %214 = sbr.rel (%p212) target = $region40
        $region39: #{tpu_custom_call.1} parent=35 // pred_region
          %215 = dma.done %s208, 1024
        $region40: #{tpu_custom_call.1} parent=35 // pred_fallthru
          _
        %p216 = pneg %p51
        %p217 = pneg %p48
        %s218 = sand.u32 %s66, 1
        %s219 = scalar_lea.sflag [#allocation5], %s218
        %s220 = sand.u32 %s66, 1
        %s221 = smul.addr %s220, 64
        %s222 = scalar_lea.vmem [#allocation4], %s221
        %p223 = pneg %p79
        %p224 = pneg %p76
        %p225 = pneg %p100
        %p226 = pneg %p97
        %p227 = pneg %p121
        %p228 = pneg %p118
        %p229 = pneg %p149
        %p230 = pneg %p146
        %s231 = sand.u32 %s136, 1
        %s232 = scalar_lea.sflag [#allocation6], %s231
        %s233 = sand.u32 %s136, 1
        %s234 = smul.addr %s233, 2
        %s235 = scalar_lea.vmem [#allocation7], %s234
        %s236 = smul.u32 2, %s28
        %s237 = smul.u32 2, %s28
        %v239 = vld [vmem:[%s0] sm:$0x1]
        %v240 = vld [vmem:[%s211] sm:$0xff]
        %v241 = vld [vmem:[%s211 + $0x8] sm:$0xff]
        %v242 = vld [vmem:[%s211 + $0x10] sm:$0xff]
        %v243 = vld [vmem:[%s211 + $0x18] sm:$0xff]
        %v244 = vld [vmem:[%s211 + $0x20] sm:$0xff]
        %v245 = vld [vmem:[%s211 + $0x28] sm:$0xff]
        %v246 = vld [vmem:[%s211 + $0x30] sm:$0xff]
        %v247 = vld [vmem:[%s211 + $0x38] sm:$0xff]
        %v256 = vunpack.c.l.b16 %v240
        %v257 = vunpack.c.h.b16 %v240
        %v258 = vunpack.c.l.b16 %v241
        %v259 = vunpack.c.h.b16 %v241
        %v260 = vunpack.c.l.b16 %v242
        %v261 = vunpack.c.h.b16 %v242
        %v262 = vunpack.c.l.b16 %v243
        %v263 = vunpack.c.h.b16 %v243
        %v264 = vunpack.c.l.b16 %v244
        %v265 = vunpack.c.h.b16 %v244
        %v266 = vunpack.c.l.b16 %v245
        %v267 = vunpack.c.h.b16 %v245
        %v268 = vunpack.c.l.b16 %v246
        %v269 = vunpack.c.h.b16 %v246
        %v270 = vunpack.c.l.b16 %v247
        %v271 = vunpack.c.h.b16 %v247
        %v272 = vpack.c.b16 %v258, %v256
        %v273 = vpack.c.b16 %v259, %v257
        %v274 = vpack.c.b16 %v262, %v260
        %v275 = vpack.c.b16 %v263, %v261
        %v276 = vpack.c.b16 %v266, %v264
        %v277 = vpack.c.b16 %v267, %v265
        %v278 = vpack.c.b16 %v270, %v268
        %v279 = vpack.c.b16 %v271, %v269
        %vm288 = vcmask 523264
        %v290 = vsel %vm288, %v239, 0
        %292 = vmatprep.subr.bf16.mxu0 %v273
        %293 = vmatpush1.bf16.msra.mxu0 %v272
        %294 = vmatprep.subr.bf16.mxu0 %v275
        %295 = vmatpush1.bf16.msra.mxu0 %v274
        %296 = vmatprep.subr.bf16.mxu0 %v277
        %297 = vmatpush1.bf16.msra.mxu0 %v276
        %298 = vmatprep.subr.bf16.mxu0 %v279
        %299 = vmatpush1.bf16.msra.mxu0 %v278
        %300 = vmatprep.subr.bf16.mxu0 0
        %301 = vmatpush1.bf16.msra.mxu0 0
        %302 = vmatprep.subr.bf16.mxu0 0
        %303 = vmatpush1.bf16.msra.mxu0 0
        %304 = vmatprep.subr.bf16.mxu0 0
        %305 = vmatpush1.bf16.msra.mxu0 0
        %306 = vmatprep.subr.bf16.mxu0 0
        %307 = vmatpush1.bf16.msra.mxu0 0
        %308 = vmatprep.subr.bf16.mxu0 0
        %309 = vmatpush1.bf16.msra.mxu0 0
        %310 = vmatprep.subr.bf16.mxu0 0
        %311 = vmatpush1.bf16.msra.mxu0 0
        %312 = vmatprep.subr.bf16.mxu0 0
        %313 = vmatpush1.bf16.msra.mxu0 0
        %314 = vmatprep.subr.bf16.mxu0 0
        %315 = vmatpush1.bf16.msra.mxu0 0
        %316 = vmatprep.subr.bf16.mxu0 0
        %317 = vmatpush1.bf16.msra.mxu0 0
        %318 = vmatprep.subr.bf16.mxu0 0
        %319 = vmatpush1.bf16.msra.mxu0 0
        %320 = vmatprep.subr.bf16.mxu0 0
        %321 = vmatpush1.bf16.msra.mxu0 0
        %322 = vmatprep.subr.bf16.mxu0 0
        %323 = vmatpush1.bf16.msra.mxu0 0
        %324 = vmatprep.mubr.bf16.mxu0 0
        %325 = vmatmul.mubr.bf16.gmra.mrb[0].mxu0 %v290
        %v326 = vpop.f32.mrb[0].mxu0
        %v327 = vadd.f32 0.0, %v326
        %v328 = vpop.f32.mrb[0].mxu0
        %v329 = vadd.f32 0.0, %v328
        %v330 = vpop.f32.mrb[0].mxu0
        %v331 = vpop.f32.mrb[0].mxu0
        %332 = vdwg.mxu0
        %s333 = sld [smem:[#allocation2]]
        %v334 = vstv %s333
        %v335 = vmul.f32 %v327, %v334
        %v336 = vmul.f32 %v329, %v334
        %s337 = sld [smem:[#allocation3]]
        %v338 = vstv %s337
        %v339 = vadd.f32 %v335, %v338
        %v340 = vadd.f32 %v336, %v338
        %v343 = vcombine.low %v339, %v340
        %v345 = vunpack.c.l.s4 1966171168
        %v346 = vunpack.c.0.s8 %v345
        %v347 = vlaneseq
        %v348 = vshrl.u32 %v347, 7
        %v349 = vsub.s32 %v346, %v348
        %v350 = vrot.slane %v343, %v349
        %v352 = vunpack.c.l.s4 1966171168
        %v353 = vunpack.c.0.s8 %v352
        %v354 = vlaneseq
        %v355 = vshrl.u32 %v354, 7
        %v356 = vsub.s32 %v353, %v355
        %v357 = vrot.slane %v350, %v356
        %v359 = vlaneseq
        %vm360 = vcmp.ge.s32.totalorder %v359, 0
        %vm361 = vcmp.lt.s32.totalorder %v359, 256
        %vm362 = vmand %vm360, %vm361
        %363 = vst.msk [vmem:[%s235] sm:$0x3] %vm362, %v357
        %s364 = sand.u32 %s136, 1
        %s365 = scalar_lea.sflag [#allocation6], %s364
        %s366 = sand.u32 %s136, 1
        %s367 = smul.addr %s366, 2
        %s368 = scalar_lea.vmem [#allocation7], %s367
        // Predicated region
        $region41: #{tpu_custom_call.1} parent=35 // pred_check
          %p369 = pneg %p146
        $region42: #{tpu_custom_call.1} parent=35 // pred_check_branch
          %371 = sbr.rel (%p369) target = $region44
        $region43: #{tpu_custom_call.1} parent=35 // pred_region
          %s372 = smul.u32 2, %s28
          %s374 = ssub.s32 32, 32
          %375 = vsyncadd %s365, %s374
          %s376 = smul.addr %s27, 2
          %s377 = sadd.s32 %s372, %s376
          %s378 = smul.addr %s377, 16
          %s379 = scalar_lea.hbm %s4, %s378
          %s381 = sshll.u32 %s368, 4
          %s382 = int_to_ptr.vmem [resolvable:$true] %s381
          %384 = dma.vmem_to_hbm [thread:$0]  %s382, 32, %s379, %s365
        $region44: #{tpu_custom_call.1} parent=35 // pred_fallthru
          _
      $region36: #{tpu_custom_call.1} parent=5 // pred_fallthru
        _
      %p385 = scmp.le.s32.totalorder 2, %s18
      // Predicated region
      $region45: #{tpu_custom_call.1} parent=5 // pred_check
        %p386 = pneg %p385
      $region46: #{tpu_custom_call.1} parent=5 // pred_check_branch
        %388 = sbr.rel (%p386) target = $region48
      $region47: #{tpu_custom_call.1} parent=5 // pred_region
        %s389 = ssub.s32 %s18, 2
        // Predicated region
        $region49: #{tpu_custom_call.1} parent=47 // pred_check
          %p390 = pneg %p152
        $region50: #{tpu_custom_call.1} parent=47 // pred_check_branch
          %392 = sbr.rel (%p390) target = $region52
        $region51: #{tpu_custom_call.1} parent=47 // pred_region
          %s393 = sand.u32 %s137, 1
          %s394 = scalar_lea.sflag [#allocation6], %s393
          %s395 = sand.u32 %s137, 1
          %s396 = smul.addr %s395, 2
          %s397 = scalar_lea.vmem [#allocation7], %s396
          %398 = dma.done %s394, 32
        $region52: #{tpu_custom_call.1} parent=47 // pred_fallthru
          _
      $region48: #{tpu_custom_call.1} parent=5 // pred_fallthru
        _
    $region6: #{tpu_custom_call.1} parent=1 // loop_footer
      %s22 = sadd.s32 1, %s18
    $region7: #{tpu_custom_call.1} parent=1 // loop_footer_branch
      %17 = sbr.rel target = $region3
    $region8: #{tpu_custom_call.1} parent=1 // loop_exit
      _
    %399 = vsyncpa [#allocation5], 1
    %s400 = scalar_lea.sflag [#allocation5], 1
    %401 = vsyncpa %s400, 1
    %402 = vsyncpa [#allocation6], 1
    %s403 = scalar_lea.sflag [#allocation6], 1
    %404 = vsyncpa %s403, 1

</llo_original>
